<compile_context>
chip_gen: v6e
topology: v6e:2x2x1
jax: 0.10.0
libtpu: 0.0.40
codegen_flags: <defaults>
</compile_context>

<pallas_src>
import numpy as np
import jax
import jax.numpy as jnp
from jax.experimental import pallas as pl
from jax.experimental.pallas import tpu as pltpu


def build_sinusoid_table(time_steps: int, embed_size: int, dtype=jnp.float32):
    """Deterministic sin-PE table (replaces torch.load of the .pt file)."""
    pos = np.arange(time_steps, dtype=np.float64)[:, None]            # (T, 1)
    dim = np.arange(embed_size, dtype=np.float64)[None, :]            # (1, D)
    angle = pos / np.power(10000.0, (2.0 * (dim // 2)) / embed_size)  # (T, D)
    table = np.zeros((time_steps, embed_size), dtype=np.float64)
    table[:, 0::2] = np.sin(angle[:, 0::2])
    table[:, 1::2] = np.cos(angle[:, 1::2])
    return jnp.asarray(table, dtype=dtype)


def _gather_kernel(idx_ref, table_ref, out_ref):
    # idx_ref:   (TM, 1) int32 tile of flattened indices (VMEM).
    # table_ref: (T, D) PE table (bf16 by default), resident across the grid.
    # out_ref:   (TM, D) output tile (sublane/lane dense).
    idx = idx_ref[...]                                      # (TM, 1)
    t = table_ref.shape[0]
    # (1, T) iota row; the `==` broadcasts it against the (TM, 1) index column
    # -> (TM, T) one-hot emitted directly in the compute dtype.  Avoids
    # materializing a (TM, T) int32 iota every grid step.
    col = jax.lax.broadcasted_iota(jnp.int32, (1, t), 1)    # (1, T)
    onehot = (col == idx).astype(table_ref.dtype)           # (TM, T)
    # bf16 x bf16 -> single-pass MXU matmul with f32 accumulation.  If the
    # table is kept in f32, force HIGHEST precision so the 0/1 selection stays
    # exact (default precision would silently round to bf16 passes).
    precision = (jax.lax.Precision.HIGHEST
                 if table_ref.dtype == jnp.float32 else None)
    out_ref[...] = jnp.dot(
        onehot, table_ref[...],
        preferred_element_type=jnp.float32,
        precision=precision,
    ).astype(out_ref.dtype)


def _choose_tile(n: int, tm: int) -> int:
    """Tile rows: multiple of 16 (bf16 sublane pack), >=2 grid steps if possible."""
    tm = max(16, (tm // 16) * 16)
    if n >= 32:
        half = ((n + 1) // 2 + 15) // 16 * 16   # ceil(n/2) rounded up to 16
        tm = min(tm, half)                      # ensures >= 2 grid steps (v7x: 2 TCs)
    return tm


def pos2vec_forward(x, table, *, tm=512, compute_dtype=jnp.bfloat16,
                    out_dtype=None):
    """Equivalent of `pos2vec_mat[x.flatten().long()]` -> (N, D).

    The table is computed/stored in `compute_dtype` (bf16 by default) inside
    the kernel; output dtype defaults to the same.
    """
    t, d = table.shape
    if out_dtype is None:
        out_dtype = compute_dtype
    tbl = table.astype(compute_dtype)

    idx = x.reshape(-1).astype(jnp.int32)
    # Bounds safety: clamp to a valid row (valid inputs are already in [0, T)).
    idx = jnp.clip(idx, 0, t - 1)
    n = int(idx.shape[0])

    # Tiny-N fast path: a single XLA gather beats padding to a full tile plus
    # a kernel launch.
    if n < 64:
        return jnp.take(tbl, idx, axis=0).astype(out_dtype)

    tm = _choose_tile(n, tm)
    n_pad = tm * pl.cdiv(n, tm)
    idx_pad = jnp.pad(idx, (0, n_pad - n)).reshape(n_pad, 1)

    tbytes = jnp.dtype(compute_dtype).itemsize
    obytes = jnp.dtype(out_dtype).itemsize
    cost = pl.CostEstimate(
        flops=2 * n_pad * t * d,               # one-hot MXU matmul (advisory)
        transcendentals=0,
        bytes_accessed=n_pad * d * obytes + t * d * tbytes + n_pad * 4,
    )

    out = pl.pallas_call(
        _gather_kernel,
        out_shape=jax.ShapeDtypeStruct((n_pad, d), out_dtype),
        grid_spec=pltpu.PrefetchScalarGridSpec(
            num_scalar_prefetch=0,
            grid=(n_pad // tm,),
            in_specs=[
                # Per-tile index block (TM, 1): sublane dim multiple of 16,
                # last dim equals the full extent.
                pl.BlockSpec((tm, 1), lambda i: (i, 0)),
                # Full table, constant block index -> DMA'd once, resident.
                pl.BlockSpec((t, d), lambda i: (0, 0)),
            ],
            out_specs=pl.BlockSpec((tm, d), lambda i: (i, 0)),
        ),
        compiler_params=pltpu.CompilerParams(
            dimension_semantics=("parallel",)),
        cost_estimate=cost,
    )(idx_pad, tbl)

    return out[:n]


if __name__ == "__main__":
    # Small shapes consistent with the module (real model: T=1024, D=768).
    TIME_STEPS = 128
    EMBED_SIZE = 256  # lane-aligned

    table = build_sinusoid_table(TIME_STEPS, EMBED_SIZE)   # f32 master table

    key = jax.random.PRNGKey(0)
    # x: batch of time-step indices; any shape / integer dtype (flattened).
    x = jax.random.randint(key, (4, 60), minval=0, maxval=TIME_STEPS,
                           dtype=jnp.int32)

    out = pos2vec_forward(x, table, tm=128)
    out = jax.block_until_ready(out)

    assert out.shape == (x.size, EMBED_SIZE)
    assert out.dtype == jnp.bfloat16

    idx = x.reshape(-1)
    # Exact check against a gather from the bf16 table (the selection matmul
    # is exact for 0/1 one-hot rows).
    ref_bf16 = jnp.take(table.astype(jnp.bfloat16), idx, axis=0)
    np.testing.assert_allclose(np.asarray(out.astype(jnp.float32)),
                               np.asarray(ref_bf16.astype(jnp.float32)),
                               rtol=0, atol=1e-6)
    # Loose check against the original f32 table (bf16 rounding only).
    ref_f32 = jnp.take(table, idx, axis=0)
    np.testing.assert_allclose(np.asarray(out.astype(jnp.float32)),
                               np.asarray(ref_f32),
                               rtol=0, atol=1e-2)

    print("KERNEL_OK")
</pallas_src>

<mosaic_0001>
module attributes {stable_mosaic.version = 11 : i64} {
  func.func @_gather_kernel(%arg0: i32, %arg1: memref<128x1xi32, #tpu.memory_space<vmem>>, %arg2: memref<128x256xbf16, #tpu.memory_space<vmem>>, %arg3: memref<128x256xbf16, #tpu.memory_space<vmem>>) attributes {dimension_semantics = [#tpu.dimension_semantics<parallel>], iteration_bounds = array<i64: 2>, scalar_prefetch = 0 : i64, scratch_operands = 0 : i64, tpu.core_type = #tpu.core_type<tc>, window_params = [{transform_indices = @transform_0, window_bounds = array<i64: 128, 1>}, {pipeline_mode = #tpu.pipeline_mode<synchronous>, transform_indices = @transform_1, window_bounds = array<i64: 128, 256>}, {transform_indices = @transform_2, window_bounds = array<i64: 128, 256>}]} {
    %c0 = arith.constant 0 : index
    %c0_0 = arith.constant 0 : index
    %0 = vector.load %arg1[%c0, %c0_0] : memref<128x1xi32, #tpu.memory_space<vmem>>, vector<128x1xi32>
    %1 = tpu.iota {dimensions = array<i32: 1>} : vector<1x128xi32>
    %2 = vector.broadcast %1 : vector<1x128xi32> to vector<128x128xi32>
    %3 = vector.broadcast %0 : vector<128x1xi32> to vector<128x128xi32>
    %4 = arith.cmpi eq, %2, %3 : vector<128x128xi32>
    %5 = arith.extui %4 : vector<128x128xi1> to vector<128x128xi32>
    %6 = arith.sitofp %5 : vector<128x128xi32> to vector<128x128xf32>
    %7 = arith.truncf %6 : vector<128x128xf32> to vector<128x128xbf16>
    %c0_1 = arith.constant 0 : index
    %c0_2 = arith.constant 0 : index
    %8 = vector.load %arg2[%c0_1, %c0_2] : memref<128x256xbf16, #tpu.memory_space<vmem>>, vector<128x256xbf16>
    %cst = arith.constant dense<0.000000e+00> : vector<128x256xf32>
    %9 = tpu.matmul %7, %8, %cst {dimension_numbers = #tpu.dot_dimension_numbers<[1], [0], [0], [1], [0, 0, 1, 1], [], []>} : vector<128x128xbf16>, vector<128x256xbf16>, vector<128x256xf32> -> vector<128x256xf32>
    %10 = arith.truncf %9 : vector<128x256xf32> to vector<128x256xbf16>
    %c0_3 = arith.constant 0 : index
    %c0_4 = arith.constant 0 : index
    %11 = vector.load %arg3[%c0_3, %c0_4] : memref<128x256xbf16, #tpu.memory_space<vmem>>, vector<128x256xbf16>
    tpu.vector_store %arg3[%c0_3, %c0_4], %10 {strides = array<i32>} : memref<128x256xbf16, #tpu.memory_space<vmem>>, vector<128x256xbf16>,
    return
  }
  func.func @transform_0(%arg0: i32) -> (i32, i32) {
    %c0_i32 = arith.constant 0 : i32
    %c0_i32_0 = arith.constant 0 : i32
    return %arg0, %c0_i32 : i32, i32
  }
  func.func @transform_1(%arg0: i32) -> (i32, i32) {
    %c0_i32 = arith.constant 0 : i32
    %c0_i32_0 = arith.constant 0 : i32
    %c0_i32_1 = arith.constant 0 : i32
    return %c0_i32, %c0_i32_0 : i32, i32
  }
  func.func @transform_2(%arg0: i32) -> (i32, i32) {
    %c0_i32 = arith.constant 0 : i32
    %c0_i32_0 = arith.constant 0 : i32
    return %arg0, %c0_i32 : i32, i32
  }
}

</mosaic_0001>

<llo_original>
// kernel: tpu_custom_call.1
$region0: #{tpu_custom_call.1}
  #allocation0 [shape = 'u32[]', space=smem, size = 0x4, offset = 0x4, fixed_abs, tag = 'smem constant byte address 0x4 - core index']
  #allocation1 [shape = 'u32[144,128]{1,0:T(1,128)}', space=vmem, size = 0x12000, scoped, tag = 'internal scratch']
  %s0 = inlined_call_operand.vmem [shape: s32[256,1], index: 0, kind: input, shape index: {}]
  %s1 = inlined_call_operand.vmem [shape: bf16[128,256], index: 1, kind: input, shape index: {}]
  %s2 = inlined_call_operand.hbm [shape: bf16[256,256], index: 2, kind: output, shape index: {}]
  %s3 = sld [smem:[#allocation0]]
  $region41: #{tpu_custom_call.1} parent=0
    _
  %s5 = ssub.s32 1, %s3
  %s6 = scalar_select 0, %s5, %s3
  $region1: #{tpu_custom_call.1} parent=0
    #allocation2 [shape = 'u8[131072]{0}', space=vmem, size = 0x20000, scoped, tag = 'output window, operand 0']
    #allocation3 [shape = 's32[2]{0}', space=sflag, size = 0x8, scoped, tag = 'scoped memory for tpu_custom_call.1']
    %7 = vsyncpa [#allocation3], 0
    %s8 = scalar_lea.sflag [#allocation3], 1
    %9 = vsyncpa %s8, 0
    loop: start=0, step=1, limit=4
    $region2: #{tpu_custom_call.1} parent=1 // loop_pre_header
      _
    $region3: #{tpu_custom_call.1} parent=1 // loop_header
      %s11 = sphi 0, %s15
      %p12 = scmp.ge.s32.totalorder %s11, 4
      %s21 = sphi 0, %s23
      %s24 = sphi 0, %s21
      %s25 = sphi 0, %s24
      %s41 = sphi 0, %s25
      %s45 = sphi 0, %s45
      %s47 = sphi 0, %s45
      %s48 = sphi 0, %s47
      %s62 = sphi 0, %s48
      %s68 = sphi 0, %s70
      %s71 = sphi 0, %s68
      %s72 = sphi 0, %s71
      %s88 = sphi 0, %s72
    $region4: #{tpu_custom_call.1} parent=1 // loop_header_branch
      %14 = sbr.rel (%p12) target = $region8
    $region5: #{tpu_custom_call.1} parent=1 // loop_body
      %s16 = ssub.s32 %s11, 1
      %s17 = ssub.s32 %s11, 2
      %s18 = sadd.s32 %s11, 1
      %s19 = ssub.s32 %s11, %s18
      %p20 = scmp.eq.s32.totalorder %s19, 0
      %s22 = sadd.s32 %s21, 1
      %s23 = scalar_select %p20, %s21, %s22
      %p26 = pneg %p20
      %p27 = scmp.eq.s32.totalorder %s11, 1
      %p28 = por %p26, %p27
      %p29 = scmp.ne.s32.totalorder %s21, %s24
      %p30 = scmp.eq.s32.totalorder %s11, 0
      %p31 = por %p29, %p30
      %p32 = scmp.ne.s32.totalorder %s21, %s24
      %p33 = scmp.eq.s32.totalorder %s16, 1
      %p34 = por %p32, %p33
      %p35 = scmp.ne.s32.totalorder %s24, %s25
      %p36 = scmp.eq.s32.totalorder %s16, 0
      %p37 = por %p35, %p36
      %p38 = scmp.ne.s32.totalorder %s24, %s25
      %p39 = scmp.eq.s32.totalorder %s17, 1
      %p40 = por %p38, %p39
      %p42 = scmp.ne.s32.totalorder %s25, %s41
      %p43 = scmp.eq.s32.totalorder %s17, 0
      %p44 = por %p42, %p43
      %s46 = sadd.s32 %s45, 1
      %p49 = scmp.eq.s32.totalorder %s11, 1
      %p50 = scmp.ne.s32.totalorder %s45, %s47
      %p51 = scmp.eq.s32.totalorder %s11, 0
      %p52 = por %p50, %p51
      %p53 = scmp.ne.s32.totalorder %s45, %s47
      %p54 = scmp.eq.s32.totalorder %s16, 1
      %p55 = por %p53, %p54
      %p56 = scmp.ne.s32.totalorder %s47, %s48
      %p57 = scmp.eq.s32.totalorder %s16, 0
      %p58 = por %p56, %p57
      %p59 = scmp.ne.s32.totalorder %s47, %s48
      %p60 = scmp.eq.s32.totalorder %s17, 1
      %p61 = por %p59, %p60
      %p63 = scmp.ne.s32.totalorder %s48, %s62
      %p64 = scmp.eq.s32.totalorder %s17, 0
      %p65 = por %p63, %p64
      %s66 = ssub.s32 %s11, %s18
      %p67 = scmp.eq.s32.totalorder %s66, 0
      %s69 = sadd.s32 %s68, 1
      %s70 = scalar_select %p67, %s68, %s69
      %p73 = pneg %p67
      %p74 = scmp.eq.s32.totalorder %s11, 1
      %p75 = por %p73, %p74
      %p76 = scmp.ne.s32.totalorder %s68, %s71
      %p77 = scmp.eq.s32.totalorder %s11, 0
      %p78 = por %p76, %p77
      %p79 = scmp.ne.s32.totalorder %s68, %s71
      %p80 = scmp.eq.s32.totalorder %s16, 1
      %p81 = por %p79, %p80
      %p82 = scmp.ne.s32.totalorder %s71, %s72
      %p83 = scmp.eq.s32.totalorder %s16, 0
      %p84 = por %p82, %p83
      %p85 = scmp.ne.s32.totalorder %s71, %s72
      %p86 = scmp.eq.s32.totalorder %s17, 1
      %p87 = por %p85, %p86
      %p89 = scmp.ne.s32.totalorder %s72, %s88
      %p90 = scmp.eq.s32.totalorder %s17, 0
      %p91 = por %p89, %p90
      %p92 = scmp.le.s32.totalorder 1, %s11
      %p93 = scmp.lt.s32.totalorder %s11, 3
      %p94 = pnand %p92, %p93
      %p95 = pneg %p94
      // Predicated region
      $region9: #{tpu_custom_call.1} parent=5 // pred_check
        _
      $region10: #{tpu_custom_call.1} parent=5 // pred_check_branch
        %97 = sbr.rel (%p94) target = $region12
      $region11: #{tpu_custom_call.1} parent=5 // pred_region
        %s98 = ssub.s32 %s11, 1
        // Predicated region
        $region13: #{tpu_custom_call.1} parent=11 // pred_check
          %p99 = pneg %p58
        $region14: #{tpu_custom_call.1} parent=11 // pred_check_branch
          %101 = sbr.rel (%p99) target = $region16
        $region15: #{tpu_custom_call.1} parent=11 // pred_region
          _
        $region16: #{tpu_custom_call.1} parent=11 // pred_fallthru
          _
      $region12: #{tpu_custom_call.1} parent=5 // pred_fallthru
        _
      %p102 = scmp.lt.s32.totalorder %s11, 2
      // Predicated region
      $region17: #{tpu_custom_call.1} parent=5 // pred_check
        %p103 = pneg %p102
      $region18: #{tpu_custom_call.1} parent=5 // pred_check_branch
        %105 = sbr.rel (%p103) target = $region20
      $region19: #{tpu_custom_call.1} parent=5 // pred_region
        // Predicated region
        $region21: #{tpu_custom_call.1} parent=19 // pred_check
          %p106 = pneg %p31
        $region22: #{tpu_custom_call.1} parent=19 // pred_check_branch
          %108 = sbr.rel (%p106) target = $region24
        $region23: #{tpu_custom_call.1} parent=19 // pred_region
          %s109 = smul.u32 16, %s11
          %p110 = scmp.lt.s32.totalorder %s109, 31
          %s111 = scalar_select %p110, %s109, 31
          %s112 = smul.addr %s111, 8
          %s113 = scalar_lea.vmem %s0, %s112
          %s114 = smul.u32 16, %s11
        $region24: #{tpu_custom_call.1} parent=19 // pred_fallthru
          _
      $region20: #{tpu_custom_call.1} parent=5 // pred_fallthru
        _
      %p115 = scmp.le.s32.totalorder 1, %s11
      %p116 = scmp.lt.s32.totalorder %s11, 3
      %p117 = pnand %p115, %p116
      %p118 = pneg %p117
      // Predicated region
      $region25: #{tpu_custom_call.1} parent=5 // pred_check
        _
      $region26: #{tpu_custom_call.1} parent=5 // pred_check_branch
        %120 = sbr.rel (%p117) target = $region28
      $region27: #{tpu_custom_call.1} parent=5 // pred_region
        %s121 = ssub.s32 %s11, 1
        %s122 = smul.u32 16, %s16
        %p123 = scmp.lt.s32.totalorder %s122, 31
        %s124 = scalar_select %p123, %s122, 31
        %s125 = smul.addr %s124, 8
        %s126 = scalar_lea.vmem %s0, %s125
        %p127 = pneg %p37
        %p128 = pneg %p34
        %p129 = pneg %p58
        %p130 = pneg %p55
        %p131 = pneg %p84
        %p132 = pneg %p81
        %s133 = sand.u32 %s71, 1
        %s134 = scalar_lea.sflag [#allocation3], %s133
        %s135 = sand.u32 %s71, 1
        %s136 = smul.addr %s135, 128
        %s137 = scalar_lea.vmem [#allocation2], %s136
        %s138 = smul.u32 16, %s16
        %p139 = scmp.lt.s32.totalorder %s138, 31
        %s140 = scalar_select %p139, %s138, 31
        %s141 = smul.addr %s140, 8
        %s142 = scalar_lea.vmem %s0, %s141
        %s143 = smul.u32 16, %s16
        %s144 = smul.u32 16, %s16
        %v146 = vld [vmem:[%s142] sm:$0xff]
        %v147 = vld [vmem:[%s142 + $0x8] sm:$0xff]
        %v148 = vld [vmem:[%s142 + $0x10] sm:$0xff]
        %v149 = vld [vmem:[%s142 + $0x18] sm:$0xff]
        %v150 = vld [vmem:[%s142 + $0x20] sm:$0xff]
        %v151 = vld [vmem:[%s142 + $0x28] sm:$0xff]
        %v152 = vld [vmem:[%s142 + $0x30] sm:$0xff]
        %v153 = vld [vmem:[%s142 + $0x38] sm:$0xff]
        %v154 = vld [vmem:[%s142 + $0x40] sm:$0xff]
        %v155 = vld [vmem:[%s142 + $0x48] sm:$0xff]
        %v156 = vld [vmem:[%s142 + $0x50] sm:$0xff]
        %v157 = vld [vmem:[%s142 + $0x58] sm:$0xff]
        %v158 = vld [vmem:[%s142 + $0x60] sm:$0xff]
        %v159 = vld [vmem:[%s142 + $0x68] sm:$0xff]
        %v160 = vld [vmem:[%s142 + $0x70] sm:$0xff]
        %v161 = vld [vmem:[%s142 + $0x78] sm:$0xff]
        %v162 = vlaneseq
        %v163 = vand.u32 %v162, 127
        %164 = vset.pattern.permute.xlu0 0
        %165 = vperm.xlu0 %164, %v146
        %v166 = vpop.permute.xlu0 %165
        %167 = vset.pattern.permute.xlu0 0
        %168 = vperm.xlu0 %167, %v147
        %v169 = vpop.permute.xlu0 %168
        %170 = vset.pattern.permute.xlu0 0
        %171 = vperm.xlu0 %170, %v148
        %v172 = vpop.permute.xlu0 %171
        %173 = vset.pattern.permute.xlu0 0
        %174 = vperm.xlu0 %173, %v149
        %v175 = vpop.permute.xlu0 %174
        %176 = vset.pattern.permute.xlu0 0
        %177 = vperm.xlu0 %176, %v150
        %v178 = vpop.permute.xlu0 %177
        %179 = vset.pattern.permute.xlu0 0
        %180 = vperm.xlu0 %179, %v151
        %v181 = vpop.permute.xlu0 %180
        %182 = vset.pattern.permute.xlu0 0
        %183 = vperm.xlu0 %182, %v152
        %v184 = vpop.permute.xlu0 %183
        %185 = vset.pattern.permute.xlu0 0
        %186 = vperm.xlu0 %185, %v153
        %v187 = vpop.permute.xlu0 %186
        %188 = vset.pattern.permute.xlu0 0
        %189 = vperm.xlu0 %188, %v154
        %v190 = vpop.permute.xlu0 %189
        %191 = vset.pattern.permute.xlu0 0
        %192 = vperm.xlu0 %191, %v155
        %v193 = vpop.permute.xlu0 %192
        %194 = vset.pattern.permute.xlu0 0
        %195 = vperm.xlu0 %194, %v156
        %v196 = vpop.permute.xlu0 %195
        %197 = vset.pattern.permute.xlu0 0
        %198 = vperm.xlu0 %197, %v157
        %v199 = vpop.permute.xlu0 %198
        %200 = vset.pattern.permute.xlu0 0
        %201 = vperm.xlu0 %200, %v158
        %v202 = vpop.permute.xlu0 %201
        %203 = vset.pattern.permute.xlu0 0
        %204 = vperm.xlu0 %203, %v159
        %v205 = vpop.permute.xlu0 %204
        %206 = vset.pattern.permute.xlu0 0
        %207 = vperm.xlu0 %206, %v160
        %v208 = vpop.permute.xlu0 %207
        %209 = vset.pattern.permute.xlu0 0
        %210 = vperm.xlu0 %209, %v161
        %v211 = vpop.permute.xlu0 %210
        %vm212 = vcmp.eq.s32.totalorder %v163, %v166
        %vm213 = vcmp.eq.s32.totalorder %v163, %v169
        %vm214 = vcmp.eq.s32.totalorder %v163, %v172
        %vm215 = vcmp.eq.s32.totalorder %v163, %v175
        %vm216 = vcmp.eq.s32.totalorder %v163, %v178
        %vm217 = vcmp.eq.s32.totalorder %v163, %v181
        %vm218 = vcmp.eq.s32.totalorder %v163, %v184
        %vm219 = vcmp.eq.s32.totalorder %v163, %v187
        %vm220 = vcmp.eq.s32.totalorder %v163, %v190
        %vm221 = vcmp.eq.s32.totalorder %v163, %v193
        %vm222 = vcmp.eq.s32.totalorder %v163, %v196
        %vm223 = vcmp.eq.s32.totalorder %v163, %v199
        %vm224 = vcmp.eq.s32.totalorder %v163, %v202
        %vm225 = vcmp.eq.s32.totalorder %v163, %v205
        %vm226 = vcmp.eq.s32.totalorder %v163, %v208
        %vm227 = vcmp.eq.s32.totalorder %v163, %v211
        %v228 = vsel %vm212, 1, 0
        %v229 = vsel %vm213, 1, 0
        %v230 = vsel %vm214, 1, 0
        %v231 = vsel %vm215, 1, 0
        %v232 = vsel %vm216, 1, 0
        %v233 = vsel %vm217, 1, 0
        %v234 = vsel %vm218, 1, 0
        %v235 = vsel %vm219, 1, 0
        %v236 = vsel %vm220, 1, 0
        %v237 = vsel %vm221, 1, 0
        %v238 = vsel %vm222, 1, 0
        %v239 = vsel %vm223, 1, 0
        %v240 = vsel %vm224, 1, 0
        %v241 = vsel %vm225, 1, 0
        %v242 = vsel %vm226, 1, 0
        %v243 = vsel %vm227, 1, 0
        %v244 = vcvt.s32.f32 %v228
        %v245 = vcvt.s32.f32 %v229
        %v246 = vcvt.s32.f32 %v230
        %v247 = vcvt.s32.f32 %v231
        %v248 = vcvt.s32.f32 %v232
        %v249 = vcvt.s32.f32 %v233
        %v250 = vcvt.s32.f32 %v234
        %v251 = vcvt.s32.f32 %v235
        %v252 = vcvt.s32.f32 %v236
        %v253 = vcvt.s32.f32 %v237
        %v254 = vcvt.s32.f32 %v238
        %v255 = vcvt.s32.f32 %v239
        %v256 = vcvt.s32.f32 %v240
        %v257 = vcvt.s32.f32 %v241
        %v258 = vcvt.s32.f32 %v242
        %v259 = vcvt.s32.f32 %v243
        %v260 = vpack.c.bf16 %v245, %v244
        %v261 = vpack.c.bf16 %v247, %v246
        %v262 = vpack.c.bf16 %v249, %v248
        %v263 = vpack.c.bf16 %v251, %v250
        %v264 = vpack.c.bf16 %v253, %v252
        %v265 = vpack.c.bf16 %v255, %v254
        %v266 = vpack.c.bf16 %v257, %v256
        %v267 = vpack.c.bf16 %v259, %v258
        %v268 = vld [vmem:[%s1] sm:$0xff]
        %v269 = vld [vmem:[%s1 + $0x8] sm:$0xff]
        %v270 = vld [vmem:[%s1 + $0x10] sm:$0xff]
        %v271 = vld [vmem:[%s1 + $0x18] sm:$0xff]
        %v272 = vld [vmem:[%s1 + $0x20] sm:$0xff]
        %v273 = vld [vmem:[%s1 + $0x28] sm:$0xff]
        %v274 = vld [vmem:[%s1 + $0x30] sm:$0xff]
        %v275 = vld [vmem:[%s1 + $0x38] sm:$0xff]
        %v276 = vld [vmem:[%s1 + $0x40] sm:$0xff]
        %v277 = vld [vmem:[%s1 + $0x48] sm:$0xff]
        %v278 = vld [vmem:[%s1 + $0x50] sm:$0xff]
        %v279 = vld [vmem:[%s1 + $0x58] sm:$0xff]
        %v280 = vld [vmem:[%s1 + $0x60] sm:$0xff]
        %v281 = vld [vmem:[%s1 + $0x68] sm:$0xff]
        %v282 = vld [vmem:[%s1 + $0x70] sm:$0xff]
        %v283 = vld [vmem:[%s1 + $0x78] sm:$0xff]
        %v300 = vunpack.c.l.b16 %v268
        %v301 = vunpack.c.h.b16 %v268
        %v302 = vunpack.c.l.b16 %v269
        %v303 = vunpack.c.h.b16 %v269
        %v304 = vunpack.c.l.b16 %v270
        %v305 = vunpack.c.h.b16 %v270
        %v306 = vunpack.c.l.b16 %v271
        %v307 = vunpack.c.h.b16 %v271
        %v308 = vunpack.c.l.b16 %v272
        %v309 = vunpack.c.h.b16 %v272
        %v310 = vunpack.c.l.b16 %v273
        %v311 = vunpack.c.h.b16 %v273
        %v312 = vunpack.c.l.b16 %v274
        %v313 = vunpack.c.h.b16 %v274
        %v314 = vunpack.c.l.b16 %v275
        %v315 = vunpack.c.h.b16 %v275
        %v316 = vunpack.c.l.b16 %v276
        %v317 = vunpack.c.h.b16 %v276
        %v318 = vunpack.c.l.b16 %v277
        %v319 = vunpack.c.h.b16 %v277
        %v320 = vunpack.c.l.b16 %v278
        %v321 = vunpack.c.h.b16 %v278
        %v322 = vunpack.c.l.b16 %v279
        %v323 = vunpack.c.h.b16 %v279
        %v324 = vunpack.c.l.b16 %v280
        %v325 = vunpack.c.h.b16 %v280
        %v326 = vunpack.c.l.b16 %v281
        %v327 = vunpack.c.h.b16 %v281
        %v328 = vunpack.c.l.b16 %v282
        %v329 = vunpack.c.h.b16 %v282
        %v330 = vunpack.c.l.b16 %v283
        %v331 = vunpack.c.h.b16 %v283
        %v332 = vpack.c.b16 %v302, %v300
        %v333 = vpack.c.b16 %v303, %v301
        %v334 = vpack.c.b16 %v306, %v304
        %v335 = vpack.c.b16 %v307, %v305
        %v336 = vpack.c.b16 %v310, %v308
        %v337 = vpack.c.b16 %v311, %v309
        %v338 = vpack.c.b16 %v314, %v312
        %v339 = vpack.c.b16 %v315, %v313
        %v340 = vpack.c.b16 %v318, %v316
        %v341 = vpack.c.b16 %v319, %v317
        %v342 = vpack.c.b16 %v322, %v320
        %v343 = vpack.c.b16 %v323, %v321
        %v344 = vpack.c.b16 %v326, %v324
        %v345 = vpack.c.b16 %v327, %v325
        %v346 = vpack.c.b16 %v330, %v328
        %v347 = vpack.c.b16 %v331, %v329
        %364 = vmatprep.subr.bf16.mxu0 %v347
        %365 = vmatpush1.bf16.msra.mxu0 %v346
        %366 = vmatprep.subr.bf16.mxu0 %v345
        %367 = vmatpush1.bf16.msra.mxu0 %v344
        %368 = vmatprep.subr.bf16.mxu0 %v343
        %369 = vmatpush1.bf16.msra.mxu0 %v342
        %370 = vmatprep.subr.bf16.mxu0 %v341
        %371 = vmatpush1.bf16.msra.mxu0 %v340
        %372 = vmatprep.subr.bf16.mxu0 %v339
        %373 = vmatpush1.bf16.msra.mxu0 %v338
        %374 = vmatprep.subr.bf16.mxu0 %v337
        %375 = vmatpush1.bf16.msra.mxu0 %v336
        %376 = vmatprep.subr.bf16.mxu0 %v335
        %377 = vmatpush1.bf16.msra.mxu0 %v334
        %378 = vmatprep.subr.bf16.mxu0 %v333
        %379 = vmatpush1.bf16.msra.mxu0 %v332
        %380 = vmatprep.subr.bf16.mxu0 0
        %381 = vmatpush2.bf16.msra.mxu0 0
        %382 = vmatprep.subr.bf16.mxu0 0
        %383 = vmatpush2.bf16.msra.mxu0 0
        %384 = vmatprep.subr.bf16.mxu0 0
        %385 = vmatpush2.bf16.msra.mxu0 0
        %386 = vmatprep.subr.bf16.mxu0 0
        %387 = vmatpush2.bf16.msra.mxu0 0
        %388 = vmatprep.subr.bf16.mxu0 0
        %389 = vmatpush2.bf16.msra.mxu0 0
        %390 = vmatprep.subr.bf16.mxu0 0
        %391 = vmatpush2.bf16.msra.mxu0 0
        %392 = vmatprep.subr.bf16.mxu0 0
        %393 = vmatpush2.bf16.msra.mxu0 0
        %394 = vmatprep.subr.bf16.mxu0 0
        %395 = vmatpush2.bf16.msra.mxu0 0
        %396 = vmatprep.mubr.bf16.mxu0 0
        %397 = vmatmul.mubr.bf16.gmra.mxu0 %v260
        %v398 = vpop.f32.mrf.mxu0
        %v399 = vadd.f32 0.0, %v398
        %v400 = vpop.f32.mrf.mxu0
        %v401 = vadd.f32 0.0, %v400
        %v402 = vpop.f32.mrf.mxu0
        %v403 = vadd.f32 0.0, %v402
        %v404 = vpop.f32.mrf.mxu0
        %v405 = vadd.f32 0.0, %v404
        %406 = vmatprep.mubr.bf16.mxu0 0
        %407 = vmatmul.mubr.bf16.gmra.mxu0 %v261
        %v408 = vpop.f32.mrf.mxu0
        %v409 = vadd.f32 0.0, %v408
        %v410 = vpop.f32.mrf.mxu0
        %v411 = vadd.f32 0.0, %v410
        %v412 = vpop.f32.mrf.mxu0
        %v413 = vadd.f32 0.0, %v412
        %v414 = vpop.f32.mrf.mxu0
        %v415 = vadd.f32 0.0, %v414
        %416 = vmatprep.mubr.bf16.mxu0 0
        %417 = vmatmul.mubr.bf16.gmra.mxu0 %v262
        %v418 = vpop.f32.mrf.mxu0
        %v419 = vadd.f32 0.0, %v418
        %v420 = vpop.f32.mrf.mxu0
        %v421 = vadd.f32 0.0, %v420
        %v422 = vpop.f32.mrf.mxu0
        %v423 = vadd.f32 0.0, %v422
        %v424 = vpop.f32.mrf.mxu0
        %v425 = vadd.f32 0.0, %v424
        %426 = vmatprep.mubr.bf16.mxu0 0
        %427 = vmatmul.mubr.bf16.gmra.mxu0 %v263
        %v428 = vpop.f32.mrf.mxu0
        %v429 = vadd.f32 0.0, %v428
        %v430 = vpop.f32.mrf.mxu0
        %v431 = vadd.f32 0.0, %v430
        %v432 = vpop.f32.mrf.mxu0
        %v433 = vadd.f32 0.0, %v432
        %v434 = vpop.f32.mrf.mxu0
        %v435 = vadd.f32 0.0, %v434
        %436 = vmatprep.mubr.bf16.mxu0 0
        %437 = vmatmul.mubr.bf16.gmra.mxu0 %v264
        %v438 = vpop.f32.mrf.mxu0
        %v439 = vadd.f32 0.0, %v438
        %v440 = vpop.f32.mrf.mxu0
        %v441 = vadd.f32 0.0, %v440
        %v442 = vpop.f32.mrf.mxu0
        %v443 = vadd.f32 0.0, %v442
        %v444 = vpop.f32.mrf.mxu0
        %v445 = vadd.f32 0.0, %v444
        %446 = vmatprep.mubr.bf16.mxu0 0
        %447 = vmatmul.mubr.bf16.gmra.mxu0 %v265
        %v448 = vpop.f32.mrf.mxu0
        %v449 = vadd.f32 0.0, %v448
        %v450 = vpop.f32.mrf.mxu0
        %v451 = vadd.f32 0.0, %v450
        %v452 = vpop.f32.mrf.mxu0
        %v453 = vadd.f32 0.0, %v452
        %v454 = vpop.f32.mrf.mxu0
        %v455 = vadd.f32 0.0, %v454
        %456 = vmatprep.mubr.bf16.mxu0 0
        %457 = vmatmul.mubr.bf16.gmra.mxu0 %v266
        %v458 = vpop.f32.mrf.mxu0
        %v459 = vadd.f32 0.0, %v458
        %v460 = vpop.f32.mrf.mxu0
        %v461 = vadd.f32 0.0, %v460
        %v462 = vpop.f32.mrf.mxu0
        %v463 = vadd.f32 0.0, %v462
        %v464 = vpop.f32.mrf.mxu0
        %v465 = vadd.f32 0.0, %v464
        %466 = vmatprep.mubr.bf16.mxu0 0
        %467 = vmatmul.mubr.bf16.gmra.mxu0 %v267
        %v468 = vpop.f32.mrf.mxu0
        %v469 = vadd.f32 0.0, %v468
        %v470 = vpop.f32.mrf.mxu0
        %v471 = vadd.f32 0.0, %v470
        %v472 = vpop.f32.mrf.mxu0
        %v473 = vadd.f32 0.0, %v472
        %v474 = vpop.f32.mrf.mxu0
        %v475 = vadd.f32 0.0, %v474
        %476 = vdwg.mxu0
        %v477 = vpack.c.bf16 %v403, %v399
        %v478 = vpack.c.bf16 %v405, %v401
        %v479 = vpack.c.bf16 %v413, %v409
        %v480 = vpack.c.bf16 %v415, %v411
        %v481 = vpack.c.bf16 %v423, %v419
        %v482 = vpack.c.bf16 %v425, %v421
        %v483 = vpack.c.bf16 %v433, %v429
        %v484 = vpack.c.bf16 %v435, %v431
        %v485 = vpack.c.bf16 %v443, %v439
        %v486 = vpack.c.bf16 %v445, %v441
        %v487 = vpack.c.bf16 %v453, %v449
        %v488 = vpack.c.bf16 %v455, %v451
        %v489 = vpack.c.bf16 %v463, %v459
        %v490 = vpack.c.bf16 %v465, %v461
        %v491 = vpack.c.bf16 %v473, %v469
        %v492 = vpack.c.bf16 %v475, %v471
        %v509 = vunpack.c.l.b16 %v477
        %v510 = vunpack.c.l.b16 %v478
        %v511 = vunpack.c.h.b16 %v477
        %v512 = vunpack.c.h.b16 %v478
        %v513 = vunpack.c.l.b16 %v479
        %v514 = vunpack.c.l.b16 %v480
        %v515 = vunpack.c.h.b16 %v479
        %v516 = vunpack.c.h.b16 %v480
        %v517 = vunpack.c.l.b16 %v481
        %v518 = vunpack.c.l.b16 %v482
        %v519 = vunpack.c.h.b16 %v481
        %v520 = vunpack.c.h.b16 %v482
        %v521 = vunpack.c.l.b16 %v483
        %v522 = vunpack.c.l.b16 %v484
        %v523 = vunpack.c.h.b16 %v483
        %v524 = vunpack.c.h.b16 %v484
        %v525 = vunpack.c.l.b16 %v485
        %v526 = vunpack.c.l.b16 %v486
        %v527 = vunpack.c.h.b16 %v485
        %v528 = vunpack.c.h.b16 %v486
        %v529 = vunpack.c.l.b16 %v487
        %v530 = vunpack.c.l.b16 %v488
        %v531 = vunpack.c.h.b16 %v487
        %v532 = vunpack.c.h.b16 %v488
        %v533 = vunpack.c.l.b16 %v489
        %v534 = vunpack.c.l.b16 %v490
        %v535 = vunpack.c.h.b16 %v489
        %v536 = vunpack.c.h.b16 %v490
        %v537 = vunpack.c.l.b16 %v491
        %v538 = vunpack.c.l.b16 %v492
        %v539 = vunpack.c.h.b16 %v491
        %v540 = vunpack.c.h.b16 %v492
        %v541 = vpack.c.b16 %v510, %v509
        %v542 = vpack.c.b16 %v512, %v511
        %v543 = vpack.c.b16 %v514, %v513
        %v544 = vpack.c.b16 %v516, %v515
        %v545 = vpack.c.b16 %v518, %v517
        %v546 = vpack.c.b16 %v520, %v519
        %v547 = vpack.c.b16 %v522, %v521
        %v548 = vpack.c.b16 %v524, %v523
        %v549 = vpack.c.b16 %v526, %v525
        %v550 = vpack.c.b16 %v528, %v527
        %v551 = vpack.c.b16 %v530, %v529
        %v552 = vpack.c.b16 %v532, %v531
        %v553 = vpack.c.b16 %v534, %v533
        %v554 = vpack.c.b16 %v536, %v535
        %v555 = vpack.c.b16 %v538, %v537
        %v556 = vpack.c.b16 %v540, %v539
        %573 = vst [vmem:[%s137] sm:$0xff] %v541
        %574 = vst [vmem:[%s137 + $0x8] sm:$0xff] %v542
        %575 = vst [vmem:[%s137 + $0x10] sm:$0xff] %v543
        %576 = vst [vmem:[%s137 + $0x18] sm:$0xff] %v544
        %577 = vst [vmem:[%s137 + $0x20] sm:$0xff] %v545
        %578 = vst [vmem:[%s137 + $0x28] sm:$0xff] %v546
        %579 = vst [vmem:[%s137 + $0x30] sm:$0xff] %v547
        %580 = vst [vmem:[%s137 + $0x38] sm:$0xff] %v548
        %581 = vst [vmem:[%s137 + $0x40] sm:$0xff] %v549
        %582 = vst [vmem:[%s137 + $0x48] sm:$0xff] %v550
        %583 = vst [vmem:[%s137 + $0x50] sm:$0xff] %v551
        %584 = vst [vmem:[%s137 + $0x58] sm:$0xff] %v552
        %585 = vst [vmem:[%s137 + $0x60] sm:$0xff] %v553
        %586 = vst [vmem:[%s137 + $0x68] sm:$0xff] %v554
        %587 = vst [vmem:[%s137 + $0x70] sm:$0xff] %v555
        %588 = vst [vmem:[%s137 + $0x78] sm:$0xff] %v556
        %s589 = sand.u32 %s71, 1
        %s590 = scalar_lea.sflag [#allocation3], %s589
        %s591 = sand.u32 %s71, 1
        %s592 = smul.addr %s591, 128
        %s593 = scalar_lea.vmem [#allocation2], %s592
        // Predicated region
        $region29: #{tpu_custom_call.1} parent=27 // pred_check
          %p594 = pneg %p81
        $region30: #{tpu_custom_call.1} parent=27 // pred_check_branch
          %596 = sbr.rel (%p594) target = $region32
        $region31: #{tpu_custom_call.1} parent=27 // pred_region
          %s597 = smul.u32 16, %s16
          %s599 = ssub.s32 2048, 2048
          %600 = vsyncadd %s590, %s599
          %s601 = smul.addr %s597, 2
          %s602 = smul.addr %s601, 64
          %s603 = scalar_lea.hbm %s2, %s602
          %s604 = sshll.u32 %s593, 4
          %s605 = int_to_ptr.vmem [resolvable:$true] %s604
          %610 = dma.vmem_to_hbm [thread:$0]  %s605, 2048, %s603, %s590, 128, 128, 8
        $region32: #{tpu_custom_call.1} parent=27 // pred_fallthru
          _
      $region28: #{tpu_custom_call.1} parent=5 // pred_fallthru
        _
      %p611 = scmp.le.s32.totalorder 2, %s11
      // Predicated region
      $region33: #{tpu_custom_call.1} parent=5 // pred_check
        %p612 = pneg %p611
      $region34: #{tpu_custom_call.1} parent=5 // pred_check_branch
        %614 = sbr.rel (%p612) target = $region36
      $region35: #{tpu_custom_call.1} parent=5 // pred_region
        %s615 = ssub.s32 %s11, 2
        // Predicated region
        $region37: #{tpu_custom_call.1} parent=35 // pred_check
          %p616 = pneg %p87
        $region38: #{tpu_custom_call.1} parent=35 // pred_check_branch
          %618 = sbr.rel (%p616) target = $region40
        $region39: #{tpu_custom_call.1} parent=35 // pred_region
          %s619 = sand.u32 %s72, 1
          %s620 = scalar_lea.sflag [#allocation3], %s619
          %s621 = sand.u32 %s72, 1
          %s622 = smul.addr %s621, 128
          %s623 = scalar_lea.vmem [#allocation2], %s622
          %624 = dma.done %s620, 2048
        $region40: #{tpu_custom_call.1} parent=35 // pred_fallthru
          _
      $region36: #{tpu_custom_call.1} parent=5 // pred_fallthru
        _
    $region6: #{tpu_custom_call.1} parent=1 // loop_footer
      %s15 = sadd.s32 1, %s11
    $region7: #{tpu_custom_call.1} parent=1 // loop_footer_branch
      %10 = sbr.rel target = $region3
    $region8: #{tpu_custom_call.1} parent=1 // loop_exit
      _
    %625 = vsyncpa [#allocation3], 1
    %s626 = scalar_lea.sflag [#allocation3], 1
    %627 = vsyncpa %s626, 1

</llo_original>
